<compile_context>
chip_gen: v5e
topology: v5e:2x2
jax: 0.10.0
libtpu: 0.0.40
codegen_flags: <defaults>
</compile_context>

<pallas_src>
import numpy as np
import jax
import jax.numpy as jnp
from jax import lax
from jax.experimental import pallas as pl
from jax.experimental.pallas import tpu as pltpu


def _upsample_onehot_mm_kernel(col_ref, row_ref, val_ref, y_ref):
    """One grid step: scatter one element chunk into one output node tile.

    col_ref : VMEM int32[E, 1]        destination node id (-1 == dropped/loser/pad)
    row_ref : VMEM int32[1, E]        destination feature column
    val_ref : VMEM f32  [1, E]        value to scatter
    y_ref   : VMEM f32  [feat_pad, node_tile]  transposed output tile, resident
              across the element-chunk grid axis (lane-dense: nodes on lanes).
    """
    feat_pad, node_tile = y_ref.shape
    elem_chunk = col_ref.shape[0]
    g = pl.program_id(1)

    # Zero the resident output tile exactly once per node tile.
    @pl.when(g == 0)
    def _zero():
        y_ref[...] = jnp.zeros_like(y_ref)

    col = col_ref[...]                                    # (E, 1)  sublane-oriented
    row = row_ref[...]                                    # (1, E)  lane-oriented
    val = val_ref[...]                                    # (1, E)  lane-oriented

    # One-hot over destination nodes of this tile: (E, node_tile).
    tile_lo = pl.program_id(0) * node_tile
    node_ids = tile_lo + lax.broadcasted_iota(jnp.int32, (elem_chunk, node_tile), 1)
    onehot_nodes = (col == node_ids).astype(jnp.float32)

    # Value routed to its feature row: (feat_pad, E).
    feat_ids = lax.broadcasted_iota(jnp.int32, (feat_pad, elem_chunk), 0)
    vals_by_feat = jnp.where(row == feat_ids, val, 0.0)

    # Conflict-free scatter == sum: one MXU matmul per (tile, chunk).
    # (After the wrapper-side dedup each output cell has at most one nonzero
    # contributor, so the f32 accumulation is exact.)
    y_ref[...] += jnp.dot(vals_by_feat, onehot_nodes,
                          preferred_element_type=jnp.float32)


def _vmem_capacity_bytes():
    """Physical VMEM per TensorCore; falls back to the smallest (v7x) figure."""
    try:
        info = pltpu.get_tpu_info()
        return int(getattr(info, "vmem_capacity_bytes", 64 * 1024 * 1024))
    except Exception:
        return 64 * 1024 * 1024


def upsample_maxindex(x, max_index, neigh_orders, num_nodes, *,
                      elem_chunk=512, node_tile=None):
    """JAX/Pallas equivalent of upsample_maxindex.forward(x, max_index)."""
    raw_nodes, feat_num = x.shape
    assert max_index.shape == x.shape
    n_elems = raw_nodes * feat_num
    feat_pad = ((feat_num + 7) // 8) * 8

    # Static row indices, computed exactly like the reference (numpy float64).
    row_index_np = np.floor(np.linspace(0.0, float(feat_num), num=n_elems))
    row_index_np[-1] = row_index_np[-1] - 1
    row_index = jnp.asarray(row_index_np, dtype=jnp.int32)

    # column_index = neigh_orders[i*7 + max_index]; the data-dependent neighbor
    # lookup stays in the wrapper (cheap XLA gather).  NB: jnp.take clips OOB
    # indices instead of erroring like PyTorch indexing would.
    col_ref_flat = (jnp.arange(raw_nodes, dtype=jnp.int32)[:, None] * 7
                    + max_index.astype(jnp.int32)).reshape(-1)
    col_index = jnp.take(neigh_orders.astype(jnp.int32), col_ref_flat)

    x_flat = x.reshape(-1).astype(jnp.float32)

    # --- last-write-wins dedup (review item 2) ------------------------------
    # winner[cell] = largest flat element index writing that cell (exactly the
    # element numpy/torch fancy assignment keeps).  scatter-max is deterministic
    # (unlike .at[].set with duplicate indices).  Losers are dropped by setting
    # their destination node to -1, so the in-kernel scatter is conflict-free.
    k_arr = jnp.arange(n_elems, dtype=jnp.int32)
    flat_dest = col_index * feat_num + row_index
    winner = jnp.full((num_nodes * feat_num,), -1, dtype=jnp.int32)
    winner = winner.at[flat_dest].max(k_arr)
    is_winner = winner[flat_dest] == k_arr
    col_index = jnp.where(is_winner, col_index, -1)

    # --- chunking / layouts ---------------------------------------------------
    elem_chunk = max(128, (int(elem_chunk) // 128) * 128)   # lane-aligned chunks
    n_chunks = pl.cdiv(n_elems, elem_chunk)
    n_elems_pad = n_chunks * elem_chunk
    pad = n_elems_pad - n_elems
    if pad:
        col_index = jnp.pad(col_index, (0, pad), constant_values=-1)
        row_index = jnp.pad(row_index, (0, pad))
        x_flat = jnp.pad(x_flat, (0, pad))
    col_2d = col_index.reshape(n_elems_pad, 1)   # sublane-oriented for node one-hot
    row_2d = row_index.reshape(1, n_elems_pad)   # lane-oriented for feature routing
    val_2d = x_flat.reshape(1, n_elems_pad)

    # --- generation-aware output tiling (review items 5/6/9) ----------------
    vmem_cap = _vmem_capacity_bytes()
    nodes_ceil = pl.cdiv(num_nodes, 128) * 128
    if node_tile is None:
        # node_tile-proportional VMEM: resident y tile + the (E, node_tile)
        # one-hot (and its int32 compare temp).  Spend ~1/4 of physical VMEM.
        per_col_bytes = 4 * (2 * elem_chunk + 2 * feat_pad)
        node_tile = (vmem_cap // 4 // per_col_bytes) // 128 * 128
        node_tile = max(128, min(nodes_ceil, int(node_tile)))
    node_tile = max(128, (int(node_tile) // 128) * 128)
    n_node_tiles = pl.cdiv(num_nodes, node_tile)
    nodes_pad = n_node_tiles * node_tile

    y_tile_bytes = feat_pad * node_tile * 4
    onehot_bytes = elem_chunk * node_tile * 4
    # col block is lane-padded to 128 in VMEM; row/val blocks sublane-padded to 8;
    # all three double-buffered by the pipeline.
    chunk_bytes = 2 * (elem_chunk * 128 * 4 + 2 * 8 * elem_chunk * 4)
    vmem_limit = (2 * y_tile_bytes + 3 * onehot_bytes + chunk_bytes
                  + feat_pad * elem_chunk * 4 + (4 << 20))
    vmem_limit = int(max(8 << 20, min(vmem_limit, vmem_cap)))

    cost = pl.CostEstimate(
        flops=2 * feat_pad * n_elems_pad * nodes_pad,
        transcendentals=0,
        bytes_accessed=n_node_tiles * n_elems_pad * 12 + feat_pad * nodes_pad * 4)

    y_t = pl.pallas_call(
        _upsample_onehot_mm_kernel,
        out_shape=jax.ShapeDtypeStruct((feat_pad, nodes_pad), jnp.float32),
        grid=(n_node_tiles, n_chunks),
        in_specs=[
            pl.BlockSpec((elem_chunk, 1), lambda t, g: (g, 0)),   # col  (E, 1)
            pl.BlockSpec((1, elem_chunk), lambda t, g: (0, g)),   # row  (1, E)
            pl.BlockSpec((1, elem_chunk), lambda t, g: (0, g)),   # val  (1, E)
        ],
        out_specs=pl.BlockSpec((feat_pad, node_tile), lambda t, g: (0, t)),
        compiler_params=pltpu.CompilerParams(
            dimension_semantics=("parallel", "arbitrary"),
            vmem_limit_bytes=vmem_limit),
        cost_estimate=cost,
    )(col_2d, row_2d, val_2d)

    # Back to the module's (num_nodes, feat_num) layout (cheap wrapper transpose).
    return y_t[:feat_num, :num_nodes].T


def _reference_numpy(x, max_index, neigh_orders, num_nodes):
    """Direct numpy transcription of the PyTorch forward (for verification)."""
    x = np.asarray(x, dtype=np.float32)
    max_index = np.asarray(max_index)
    neigh = np.asarray(neigh_orders)
    raw_nodes, feat_num = x.shape
    x_flat = x.reshape(-1)
    y = np.zeros((num_nodes, feat_num), dtype=np.float32)
    column_ref = np.zeros((raw_nodes, feat_num))
    for i in range(raw_nodes):
        column_ref[i, :] = i * 7 + max_index[i, :]
    column_index = neigh[column_ref.reshape(-1).astype(np.int64)].astype(np.int64)
    row_index = np.floor(np.linspace(0.0, float(feat_num), num=raw_nodes * feat_num))
    row_index[-1] = row_index[-1] - 1
    row_index = row_index.astype(np.int64)
    y[column_index, row_index] = x_flat
    return y


if __name__ == "__main__":
    # Smallest icosahedron level: raw_nodes=12  ->  num_nodes = 12*4 - 6 = 42
    raw_nodes = 12
    feat_num = 8
    num_nodes = raw_nodes * 4 - 6

    key = jax.random.PRNGKey(0)
    k_x, k_idx, k_no = jax.random.split(key, 3)

    x = jax.random.normal(k_x, (raw_nodes, feat_num), dtype=jnp.float32)
    max_index = jax.random.randint(k_idx, (raw_nodes, feat_num), 0, 7, dtype=jnp.int32)
    # Synthetic deterministic neighbor-order table: fine-grid node ids in
    # [0, num_nodes), one row of 7 neighbors per coarse node.
    neigh_orders = jax.random.randint(
        k_no, (raw_nodes * 7,), 0, num_nodes, dtype=jnp.int32
    )

    y = upsample_maxindex(x, max_index, neigh_orders, num_nodes)
    y = jax.block_until_ready(y)

    y_ref = _reference_numpy(x, max_index, neigh_orders, num_nodes)
    np.testing.assert_allclose(np.asarray(y), y_ref, rtol=1e-5, atol=1e-6)

    print("KERNEL_OK")
</pallas_src>

<mosaic_0001>
module attributes {stable_mosaic.version = 11 : i64} {
  func.func @_upsample_onehot_mm_kernel(%arg0: i32, %arg1: i32, %arg2: memref<512x1xi32, #tpu.memory_space<vmem>>, %arg3: memref<1x512xi32, #tpu.memory_space<vmem>>, %arg4: memref<1x512xf32, #tpu.memory_space<vmem>>, %arg5: memref<8x128xf32, #tpu.memory_space<vmem>>) attributes {dimension_semantics = [#tpu.dimension_semantics<parallel>, #tpu.dimension_semantics<arbitrary>], iteration_bounds = array<i64: 1, 1>, scalar_prefetch = 0 : i64, scratch_operands = 0 : i64, tpu.core_type = #tpu.core_type<tc>, window_params = [{transform_indices = @transform_0, window_bounds = array<i64: 512, 1>}, {transform_indices = @transform_1, window_bounds = array<i64: 1, 512>}, {transform_indices = @transform_2, window_bounds = array<i64: 1, 512>}, {transform_indices = @transform_3, window_bounds = array<i64: 8, 128>}]} {
    %c0_i32 = arith.constant 0 : i32
    %0 = arith.cmpi eq, %arg1, %c0_i32 : i32
    %1 = arith.extui %0 : i1 to i32
    %c0_i32_0 = arith.constant 0 : i32
    %2 = arith.cmpi ne, %1, %c0_i32_0 : i32
    scf.if %2 {
      %cst_11 = arith.constant 0.000000e+00 : f32
      %25 = vector.broadcast %cst_11 : f32 to vector<8x128xf32>
      %c0_12 = arith.constant 0 : index
      %c0_13 = arith.constant 0 : index
      %26 = vector.load %arg5[%c0_12, %c0_13] : memref<8x128xf32, #tpu.memory_space<vmem>>, vector<8x128xf32>
      tpu.vector_store %arg5[%c0_12, %c0_13], %25 {strides = array<i32>} : memref<8x128xf32, #tpu.memory_space<vmem>>, vector<8x128xf32>,
    } else {
    }
    %c0 = arith.constant 0 : index
    %c0_1 = arith.constant 0 : index
    %3 = vector.load %arg2[%c0, %c0_1] : memref<512x1xi32, #tpu.memory_space<vmem>>, vector<512x1xi32>
    %c0_2 = arith.constant 0 : index
    %c0_3 = arith.constant 0 : index
    %4 = vector.load %arg3[%c0_2, %c0_3] : memref<1x512xi32, #tpu.memory_space<vmem>>, vector<1x512xi32>
    %c0_4 = arith.constant 0 : index
    %c0_5 = arith.constant 0 : index
    %5 = vector.load %arg4[%c0_4, %c0_5] : memref<1x512xf32, #tpu.memory_space<vmem>>, vector<1x512xf32>
    %c128_i32 = arith.constant 128 : i32
    %6 = arith.muli %arg0, %c128_i32 : i32
    %7 = tpu.iota {dimensions = array<i32: 1>} : vector<512x128xi32>
    %8 = vector.broadcast %6 : i32 to vector<512x128xi32>
    %9 = arith.addi %8, %7 : vector<512x128xi32>
    %10 = vector.broadcast %3 : vector<512x1xi32> to vector<512x128xi32>
    %11 = arith.cmpi eq, %10, %9 : vector<512x128xi32>
    %12 = arith.extui %11 : vector<512x128xi1> to vector<512x128xi32>
    %13 = arith.sitofp %12 : vector<512x128xi32> to vector<512x128xf32>
    %14 = tpu.iota {dimensions = array<i32: 0>} : vector<8x512xi32>
    %15 = vector.broadcast %4 : vector<1x512xi32> to vector<8x512xi32>
    %16 = arith.cmpi eq, %15, %14 : vector<8x512xi32>
    %cst = arith.constant 0.000000e+00 : f32
    %17 = vector.shape_cast %5 : vector<1x512xf32> to vector<1x512xf32>
    %18 = vector.broadcast %17 : vector<1x512xf32> to vector<8x512xf32>
    %19 = vector.broadcast %cst : f32 to vector<8x512xf32>
    %20 = arith.select %16, %18, %19 : vector<8x512xi1>, vector<8x512xf32>
    %c0_6 = arith.constant 0 : index
    %c0_7 = arith.constant 0 : index
    %21 = vector.load %arg5[%c0_6, %c0_7] : memref<8x128xf32, #tpu.memory_space<vmem>>, vector<8x128xf32>
    %cst_8 = arith.constant dense<0.000000e+00> : vector<8x128xf32>
    %22 = tpu.matmul %20, %13, %cst_8 {dimension_numbers = #tpu.dot_dimension_numbers<[1], [0], [0], [1], [0, 0, 1, 1], [], []>} : vector<8x512xf32>, vector<512x128xf32>, vector<8x128xf32> -> vector<8x128xf32>
    %23 = arith.addf %21, %22 : vector<8x128xf32>
    %c0_9 = arith.constant 0 : index
    %c0_10 = arith.constant 0 : index
    %24 = vector.load %arg5[%c0_9, %c0_10] : memref<8x128xf32, #tpu.memory_space<vmem>>, vector<8x128xf32>
    tpu.vector_store %arg5[%c0_9, %c0_10], %23 {strides = array<i32>} : memref<8x128xf32, #tpu.memory_space<vmem>>, vector<8x128xf32>,
    return
  }
  func.func @transform_0(%arg0: i32, %arg1: i32) -> (i32, i32) {
    %c0_i32 = arith.constant 0 : i32
    %c0_i32_0 = arith.constant 0 : i32
    return %arg1, %c0_i32 : i32, i32
  }
  func.func @transform_1(%arg0: i32, %arg1: i32) -> (i32, i32) {
    %c0_i32 = arith.constant 0 : i32
    %c0_i32_0 = arith.constant 0 : i32
    return %c0_i32, %arg1 : i32, i32
  }
  func.func @transform_2(%arg0: i32, %arg1: i32) -> (i32, i32) {
    %c0_i32 = arith.constant 0 : i32
    %c0_i32_0 = arith.constant 0 : i32
    return %c0_i32, %arg1 : i32, i32
  }
  func.func @transform_3(%arg0: i32, %arg1: i32) -> (i32, i32) {
    %c0_i32 = arith.constant 0 : i32
    %c0_i32_0 = arith.constant 0 : i32
    return %c0_i32, %arg0 : i32, i32
  }
}

</mosaic_0001>

<llo_original>
// kernel: tpu_custom_call.1
$region0: #{tpu_custom_call.1}
  #allocation0 [shape = 'u32[]', space=smem, size = 0x4, offset = 0x4, fixed_abs, tag = 'smem constant byte address 0x4 - core index']
  #allocation1 [shape = 'u32[72,128]{1,0:T(1,128)}', space=vmem, size = 0x9000, scoped, tag = 'internal scratch']
  %s0 = inlined_call_operand.vmem [shape: s32[512,1], index: 0, kind: input, shape index: {}]
  %s1 = inlined_call_operand.vmem [shape: s32[1,512], index: 1, kind: input, shape index: {}]
  %s2 = inlined_call_operand.vmem [shape: f32[1,512], index: 2, kind: input, shape index: {}]
  %s3 = inlined_call_operand.hbm [shape: f32[8,128], index: 3, kind: output, shape index: {}]
  %s4 = sld [smem:[#allocation0]]
  $region26: #{tpu_custom_call.1} parent=0
    _
  %s6 = ssub.s32 1, %s4
  %s7 = scalar_select 0, %s6, %s4
  $region1: #{tpu_custom_call.1} parent=0
    #allocation2 [shape = 'u8[4096]{0}', space=vmem, size = 0x1000, scoped, tag = 'output window, operand 0, single buffered']
    #allocation3 [shape = 's32[1]{0}', space=sflag, size = 0x4, scoped, tag = 'scoped memory for tpu_custom_call.1']
    %8 = vsyncpa [#allocation3], 0
    // Predicated region
    $region2: #{tpu_custom_call.1} parent=1 // pred_check
      _
    $region3: #{tpu_custom_call.1} parent=1 // pred_check_branch
      %10 = sbr.rel (0) target = $region5
    $region4: #{tpu_custom_call.1} parent=1 // pred_region
      _
    $region5: #{tpu_custom_call.1} parent=1 // pred_fallthru
      _
    // Predicated region
    $region6: #{tpu_custom_call.1} parent=1 // pred_check
      _
    $region7: #{tpu_custom_call.1} parent=1 // pred_check_branch
      %12 = sbr.rel (0) target = $region9
    $region8: #{tpu_custom_call.1} parent=1 // pred_region
      _
    $region9: #{tpu_custom_call.1} parent=1 // pred_fallthru
      _
    // Predicated region
    $region10: #{tpu_custom_call.1} parent=1 // pred_check
      _
    $region11: #{tpu_custom_call.1} parent=1 // pred_check_branch
      %14 = sbr.rel (0) target = $region13
    $region12: #{tpu_custom_call.1} parent=1 // pred_region
      _
    $region13: #{tpu_custom_call.1} parent=1 // pred_fallthru
      _
    %p15 = scmp.eq.s32.totalorder 0, 0
    // Predicated region
    $region14: #{tpu_custom_call.1} parent=1 // pred_check
      %p16 = pneg %p15
    $region15: #{tpu_custom_call.1} parent=1 // pred_check_branch
      %18 = sbr.rel (%p16) target = $region17
    $region16: #{tpu_custom_call.1} parent=1 // pred_region
      %19 = vst [vmem:[#allocation2] sm:$0xff] 0.0
    $region17: #{tpu_custom_call.1} parent=1 // pred_fallthru
      _
    %v20 = vld [vmem:[%s0] sm:$0xff]
    %v21 = vld [vmem:[%s0 + $0x8] sm:$0xff]
    %v22 = vld [vmem:[%s0 + $0x10] sm:$0xff]
    %v23 = vld [vmem:[%s0 + $0x18] sm:$0xff]
    %v24 = vld [vmem:[%s0 + $0x20] sm:$0xff]
    %v25 = vld [vmem:[%s0 + $0x28] sm:$0xff]
    %v26 = vld [vmem:[%s0 + $0x30] sm:$0xff]
    %v27 = vld [vmem:[%s0 + $0x38] sm:$0xff]
    %v28 = vld [vmem:[%s0 + $0x40] sm:$0xff]
    %v29 = vld [vmem:[%s0 + $0x48] sm:$0xff]
    %v30 = vld [vmem:[%s0 + $0x50] sm:$0xff]
    %v31 = vld [vmem:[%s0 + $0x58] sm:$0xff]
    %v32 = vld [vmem:[%s0 + $0x60] sm:$0xff]
    %v33 = vld [vmem:[%s0 + $0x68] sm:$0xff]
    %v34 = vld [vmem:[%s0 + $0x70] sm:$0xff]
    %v35 = vld [vmem:[%s0 + $0x78] sm:$0xff]
    %v36 = vld [vmem:[%s0 + $0x80] sm:$0xff]
    %v37 = vld [vmem:[%s0 + $0x88] sm:$0xff]
    %v38 = vld [vmem:[%s0 + $0x90] sm:$0xff]
    %v39 = vld [vmem:[%s0 + $0x98] sm:$0xff]
    %v40 = vld [vmem:[%s0 + $0xa0] sm:$0xff]
    %v41 = vld [vmem:[%s0 + $0xa8] sm:$0xff]
    %v42 = vld [vmem:[%s0 + $0xb0] sm:$0xff]
    %v43 = vld [vmem:[%s0 + $0xb8] sm:$0xff]
    %v44 = vld [vmem:[%s0 + $0xc0] sm:$0xff]
    %v45 = vld [vmem:[%s0 + $0xc8] sm:$0xff]
    %v46 = vld [vmem:[%s0 + $0xd0] sm:$0xff]
    %v47 = vld [vmem:[%s0 + $0xd8] sm:$0xff]
    %v48 = vld [vmem:[%s0 + $0xe0] sm:$0xff]
    %v49 = vld [vmem:[%s0 + $0xe8] sm:$0xff]
    %v50 = vld [vmem:[%s0 + $0xf0] sm:$0xff]
    %v51 = vld [vmem:[%s0 + $0xf8] sm:$0xff]
    %v52 = vld [vmem:[%s0 + $0x100] sm:$0xff]
    %v53 = vld [vmem:[%s0 + $0x108] sm:$0xff]
    %v54 = vld [vmem:[%s0 + $0x110] sm:$0xff]
    %v55 = vld [vmem:[%s0 + $0x118] sm:$0xff]
    %v56 = vld [vmem:[%s0 + $0x120] sm:$0xff]
    %v57 = vld [vmem:[%s0 + $0x128] sm:$0xff]
    %v58 = vld [vmem:[%s0 + $0x130] sm:$0xff]
    %v59 = vld [vmem:[%s0 + $0x138] sm:$0xff]
    %v60 = vld [vmem:[%s0 + $0x140] sm:$0xff]
    %v61 = vld [vmem:[%s0 + $0x148] sm:$0xff]
    %v62 = vld [vmem:[%s0 + $0x150] sm:$0xff]
    %v63 = vld [vmem:[%s0 + $0x158] sm:$0xff]
    %v64 = vld [vmem:[%s0 + $0x160] sm:$0xff]
    %v65 = vld [vmem:[%s0 + $0x168] sm:$0xff]
    %v66 = vld [vmem:[%s0 + $0x170] sm:$0xff]
    %v67 = vld [vmem:[%s0 + $0x178] sm:$0xff]
    %v68 = vld [vmem:[%s0 + $0x180] sm:$0xff]
    %v69 = vld [vmem:[%s0 + $0x188] sm:$0xff]
    %v70 = vld [vmem:[%s0 + $0x190] sm:$0xff]
    %v71 = vld [vmem:[%s0 + $0x198] sm:$0xff]
    %v72 = vld [vmem:[%s0 + $0x1a0] sm:$0xff]
    %v73 = vld [vmem:[%s0 + $0x1a8] sm:$0xff]
    %v74 = vld [vmem:[%s0 + $0x1b0] sm:$0xff]
    %v75 = vld [vmem:[%s0 + $0x1b8] sm:$0xff]
    %v76 = vld [vmem:[%s0 + $0x1c0] sm:$0xff]
    %v77 = vld [vmem:[%s0 + $0x1c8] sm:$0xff]
    %v78 = vld [vmem:[%s0 + $0x1d0] sm:$0xff]
    %v79 = vld [vmem:[%s0 + $0x1d8] sm:$0xff]
    %v80 = vld [vmem:[%s0 + $0x1e0] sm:$0xff]
    %v81 = vld [vmem:[%s0 + $0x1e8] sm:$0xff]
    %v82 = vld [vmem:[%s0 + $0x1f0] sm:$0xff]
    %v83 = vld [vmem:[%s0 + $0x1f8] sm:$0xff]
    %v84 = vld [vmem:[%s1] sm:$0xf]
    %v85 = vld [vmem:[%s2] sm:$0xf]
    %s86 = smul.u32 0, 128
    %v87 = vlaneseq
    %v88 = vand.u32 %v87, 127
    %v89 = vstv %s86
    %v90 = vadd.s32 %v89, %v88
    %91 = vset.pattern.permute.xlu0 0
    %92 = vperm.xlu0 %91, %v20
    %v93 = vpop.permute.xlu0 %92
    %94 = vset.pattern.permute.xlu0 0
    %95 = vperm.xlu0 %94, %v21
    %v96 = vpop.permute.xlu0 %95
    %97 = vset.pattern.permute.xlu0 0
    %98 = vperm.xlu0 %97, %v22
    %v99 = vpop.permute.xlu0 %98
    %100 = vset.pattern.permute.xlu0 0
    %101 = vperm.xlu0 %100, %v23
    %v102 = vpop.permute.xlu0 %101
    %103 = vset.pattern.permute.xlu0 0
    %104 = vperm.xlu0 %103, %v24
    %v105 = vpop.permute.xlu0 %104
    %106 = vset.pattern.permute.xlu0 0
    %107 = vperm.xlu0 %106, %v25
    %v108 = vpop.permute.xlu0 %107
    %109 = vset.pattern.permute.xlu0 0
    %110 = vperm.xlu0 %109, %v26
    %v111 = vpop.permute.xlu0 %110
    %112 = vset.pattern.permute.xlu0 0
    %113 = vperm.xlu0 %112, %v27
    %v114 = vpop.permute.xlu0 %113
    %115 = vset.pattern.permute.xlu0 0
    %116 = vperm.xlu0 %115, %v28
    %v117 = vpop.permute.xlu0 %116
    %118 = vset.pattern.permute.xlu0 0
    %119 = vperm.xlu0 %118, %v29
    %v120 = vpop.permute.xlu0 %119
    %121 = vset.pattern.permute.xlu0 0
    %122 = vperm.xlu0 %121, %v30
    %v123 = vpop.permute.xlu0 %122
    %124 = vset.pattern.permute.xlu0 0
    %125 = vperm.xlu0 %124, %v31
    %v126 = vpop.permute.xlu0 %125
    %127 = vset.pattern.permute.xlu0 0
    %128 = vperm.xlu0 %127, %v32
    %v129 = vpop.permute.xlu0 %128
    %130 = vset.pattern.permute.xlu0 0
    %131 = vperm.xlu0 %130, %v33
    %v132 = vpop.permute.xlu0 %131
    %133 = vset.pattern.permute.xlu0 0
    %134 = vperm.xlu0 %133, %v34
    %v135 = vpop.permute.xlu0 %134
    %136 = vset.pattern.permute.xlu0 0
    %137 = vperm.xlu0 %136, %v35
    %v138 = vpop.permute.xlu0 %137
    %139 = vset.pattern.permute.xlu0 0
    %140 = vperm.xlu0 %139, %v36
    %v141 = vpop.permute.xlu0 %140
    %142 = vset.pattern.permute.xlu0 0
    %143 = vperm.xlu0 %142, %v37
    %v144 = vpop.permute.xlu0 %143
    %145 = vset.pattern.permute.xlu0 0
    %146 = vperm.xlu0 %145, %v38
    %v147 = vpop.permute.xlu0 %146
    %148 = vset.pattern.permute.xlu0 0
    %149 = vperm.xlu0 %148, %v39
    %v150 = vpop.permute.xlu0 %149
    %151 = vset.pattern.permute.xlu0 0
    %152 = vperm.xlu0 %151, %v40
    %v153 = vpop.permute.xlu0 %152
    %154 = vset.pattern.permute.xlu0 0
    %155 = vperm.xlu0 %154, %v41
    %v156 = vpop.permute.xlu0 %155
    %157 = vset.pattern.permute.xlu0 0
    %158 = vperm.xlu0 %157, %v42
    %v159 = vpop.permute.xlu0 %158
    %160 = vset.pattern.permute.xlu0 0
    %161 = vperm.xlu0 %160, %v43
    %v162 = vpop.permute.xlu0 %161
    %163 = vset.pattern.permute.xlu0 0
    %164 = vperm.xlu0 %163, %v44
    %v165 = vpop.permute.xlu0 %164
    %166 = vset.pattern.permute.xlu0 0
    %167 = vperm.xlu0 %166, %v45
    %v168 = vpop.permute.xlu0 %167
    %169 = vset.pattern.permute.xlu0 0
    %170 = vperm.xlu0 %169, %v46
    %v171 = vpop.permute.xlu0 %170
    %172 = vset.pattern.permute.xlu0 0
    %173 = vperm.xlu0 %172, %v47
    %v174 = vpop.permute.xlu0 %173
    %175 = vset.pattern.permute.xlu0 0
    %176 = vperm.xlu0 %175, %v48
    %v177 = vpop.permute.xlu0 %176
    %178 = vset.pattern.permute.xlu0 0
    %179 = vperm.xlu0 %178, %v49
    %v180 = vpop.permute.xlu0 %179
    %181 = vset.pattern.permute.xlu0 0
    %182 = vperm.xlu0 %181, %v50
    %v183 = vpop.permute.xlu0 %182
    %184 = vset.pattern.permute.xlu0 0
    %185 = vperm.xlu0 %184, %v51
    %v186 = vpop.permute.xlu0 %185
    %187 = vset.pattern.permute.xlu0 0
    %188 = vperm.xlu0 %187, %v52
    %v189 = vpop.permute.xlu0 %188
    %190 = vset.pattern.permute.xlu0 0
    %191 = vperm.xlu0 %190, %v53
    %v192 = vpop.permute.xlu0 %191
    %193 = vset.pattern.permute.xlu0 0
    %194 = vperm.xlu0 %193, %v54
    %v195 = vpop.permute.xlu0 %194
    %196 = vset.pattern.permute.xlu0 0
    %197 = vperm.xlu0 %196, %v55
    %v198 = vpop.permute.xlu0 %197
    %199 = vset.pattern.permute.xlu0 0
    %200 = vperm.xlu0 %199, %v56
    %v201 = vpop.permute.xlu0 %200
    %202 = vset.pattern.permute.xlu0 0
    %203 = vperm.xlu0 %202, %v57
    %v204 = vpop.permute.xlu0 %203
    %205 = vset.pattern.permute.xlu0 0
    %206 = vperm.xlu0 %205, %v58
    %v207 = vpop.permute.xlu0 %206
    %208 = vset.pattern.permute.xlu0 0
    %209 = vperm.xlu0 %208, %v59
    %v210 = vpop.permute.xlu0 %209
    %211 = vset.pattern.permute.xlu0 0
    %212 = vperm.xlu0 %211, %v60
    %v213 = vpop.permute.xlu0 %212
    %214 = vset.pattern.permute.xlu0 0
    %215 = vperm.xlu0 %214, %v61
    %v216 = vpop.permute.xlu0 %215
    %217 = vset.pattern.permute.xlu0 0
    %218 = vperm.xlu0 %217, %v62
    %v219 = vpop.permute.xlu0 %218
    %220 = vset.pattern.permute.xlu0 0
    %221 = vperm.xlu0 %220, %v63
    %v222 = vpop.permute.xlu0 %221
    %223 = vset.pattern.permute.xlu0 0
    %224 = vperm.xlu0 %223, %v64
    %v225 = vpop.permute.xlu0 %224
    %226 = vset.pattern.permute.xlu0 0
    %227 = vperm.xlu0 %226, %v65
    %v228 = vpop.permute.xlu0 %227
    %229 = vset.pattern.permute.xlu0 0
    %230 = vperm.xlu0 %229, %v66
    %v231 = vpop.permute.xlu0 %230
    %232 = vset.pattern.permute.xlu0 0
    %233 = vperm.xlu0 %232, %v67
    %v234 = vpop.permute.xlu0 %233
    %235 = vset.pattern.permute.xlu0 0
    %236 = vperm.xlu0 %235, %v68
    %v237 = vpop.permute.xlu0 %236
    %238 = vset.pattern.permute.xlu0 0
    %239 = vperm.xlu0 %238, %v69
    %v240 = vpop.permute.xlu0 %239
    %241 = vset.pattern.permute.xlu0 0
    %242 = vperm.xlu0 %241, %v70
    %v243 = vpop.permute.xlu0 %242
    %244 = vset.pattern.permute.xlu0 0
    %245 = vperm.xlu0 %244, %v71
    %v246 = vpop.permute.xlu0 %245
    %247 = vset.pattern.permute.xlu0 0
    %248 = vperm.xlu0 %247, %v72
    %v249 = vpop.permute.xlu0 %248
    %250 = vset.pattern.permute.xlu0 0
    %251 = vperm.xlu0 %250, %v73
    %v252 = vpop.permute.xlu0 %251
    %253 = vset.pattern.permute.xlu0 0
    %254 = vperm.xlu0 %253, %v74
    %v255 = vpop.permute.xlu0 %254
    %256 = vset.pattern.permute.xlu0 0
    %257 = vperm.xlu0 %256, %v75
    %v258 = vpop.permute.xlu0 %257
    %259 = vset.pattern.permute.xlu0 0
    %260 = vperm.xlu0 %259, %v76
    %v261 = vpop.permute.xlu0 %260
    %262 = vset.pattern.permute.xlu0 0
    %263 = vperm.xlu0 %262, %v77
    %v264 = vpop.permute.xlu0 %263
    %265 = vset.pattern.permute.xlu0 0
    %266 = vperm.xlu0 %265, %v78
    %v267 = vpop.permute.xlu0 %266
    %268 = vset.pattern.permute.xlu0 0
    %269 = vperm.xlu0 %268, %v79
    %v270 = vpop.permute.xlu0 %269
    %271 = vset.pattern.permute.xlu0 0
    %272 = vperm.xlu0 %271, %v80
    %v273 = vpop.permute.xlu0 %272
    %274 = vset.pattern.permute.xlu0 0
    %275 = vperm.xlu0 %274, %v81
    %v276 = vpop.permute.xlu0 %275
    %277 = vset.pattern.permute.xlu0 0
    %278 = vperm.xlu0 %277, %v82
    %v279 = vpop.permute.xlu0 %278
    %280 = vset.pattern.permute.xlu0 0
    %281 = vperm.xlu0 %280, %v83
    %v282 = vpop.permute.xlu0 %281
    %vm283 = vcmp.eq.s32.totalorder %v93, %v90
    %vm284 = vcmp.eq.s32.totalorder %v96, %v90
    %vm285 = vcmp.eq.s32.totalorder %v99, %v90
    %vm286 = vcmp.eq.s32.totalorder %v102, %v90
    %vm287 = vcmp.eq.s32.totalorder %v105, %v90
    %vm288 = vcmp.eq.s32.totalorder %v108, %v90
    %vm289 = vcmp.eq.s32.totalorder %v111, %v90
    %vm290 = vcmp.eq.s32.totalorder %v114, %v90
    %vm291 = vcmp.eq.s32.totalorder %v117, %v90
    %vm292 = vcmp.eq.s32.totalorder %v120, %v90
    %vm293 = vcmp.eq.s32.totalorder %v123, %v90
    %vm294 = vcmp.eq.s32.totalorder %v126, %v90
    %vm295 = vcmp.eq.s32.totalorder %v129, %v90
    %vm296 = vcmp.eq.s32.totalorder %v132, %v90
    %vm297 = vcmp.eq.s32.totalorder %v135, %v90
    %vm298 = vcmp.eq.s32.totalorder %v138, %v90
    %vm299 = vcmp.eq.s32.totalorder %v141, %v90
    %vm300 = vcmp.eq.s32.totalorder %v144, %v90
    %vm301 = vcmp.eq.s32.totalorder %v147, %v90
    %vm302 = vcmp.eq.s32.totalorder %v150, %v90
    %vm303 = vcmp.eq.s32.totalorder %v153, %v90
    %vm304 = vcmp.eq.s32.totalorder %v156, %v90
    %vm305 = vcmp.eq.s32.totalorder %v159, %v90
    %vm306 = vcmp.eq.s32.totalorder %v162, %v90
    %vm307 = vcmp.eq.s32.totalorder %v165, %v90
    %vm308 = vcmp.eq.s32.totalorder %v168, %v90
    %vm309 = vcmp.eq.s32.totalorder %v171, %v90
    %vm310 = vcmp.eq.s32.totalorder %v174, %v90
    %vm311 = vcmp.eq.s32.totalorder %v177, %v90
    %vm312 = vcmp.eq.s32.totalorder %v180, %v90
    %vm313 = vcmp.eq.s32.totalorder %v183, %v90
    %vm314 = vcmp.eq.s32.totalorder %v186, %v90
    %vm315 = vcmp.eq.s32.totalorder %v189, %v90
    %vm316 = vcmp.eq.s32.totalorder %v192, %v90
    %vm317 = vcmp.eq.s32.totalorder %v195, %v90
    %vm318 = vcmp.eq.s32.totalorder %v198, %v90
    %vm319 = vcmp.eq.s32.totalorder %v201, %v90
    %vm320 = vcmp.eq.s32.totalorder %v204, %v90
    %vm321 = vcmp.eq.s32.totalorder %v207, %v90
    %vm322 = vcmp.eq.s32.totalorder %v210, %v90
    %vm323 = vcmp.eq.s32.totalorder %v213, %v90
    %vm324 = vcmp.eq.s32.totalorder %v216, %v90
    %vm325 = vcmp.eq.s32.totalorder %v219, %v90
    %vm326 = vcmp.eq.s32.totalorder %v222, %v90
    %vm327 = vcmp.eq.s32.totalorder %v225, %v90
    %vm328 = vcmp.eq.s32.totalorder %v228, %v90
    %vm329 = vcmp.eq.s32.totalorder %v231, %v90
    %vm330 = vcmp.eq.s32.totalorder %v234, %v90
    %vm331 = vcmp.eq.s32.totalorder %v237, %v90
    %vm332 = vcmp.eq.s32.totalorder %v240, %v90
    %vm333 = vcmp.eq.s32.totalorder %v243, %v90
    %vm334 = vcmp.eq.s32.totalorder %v246, %v90
    %vm335 = vcmp.eq.s32.totalorder %v249, %v90
    %vm336 = vcmp.eq.s32.totalorder %v252, %v90
    %vm337 = vcmp.eq.s32.totalorder %v255, %v90
    %vm338 = vcmp.eq.s32.totalorder %v258, %v90
    %vm339 = vcmp.eq.s32.totalorder %v261, %v90
    %vm340 = vcmp.eq.s32.totalorder %v264, %v90
    %vm341 = vcmp.eq.s32.totalorder %v267, %v90
    %vm342 = vcmp.eq.s32.totalorder %v270, %v90
    %vm343 = vcmp.eq.s32.totalorder %v273, %v90
    %vm344 = vcmp.eq.s32.totalorder %v276, %v90
    %vm345 = vcmp.eq.s32.totalorder %v279, %v90
    %vm346 = vcmp.eq.s32.totalorder %v282, %v90
    %v347 = vsel %vm283, 1, 0
    %v348 = vsel %vm284, 1, 0
    %v349 = vsel %vm285, 1, 0
    %v350 = vsel %vm286, 1, 0
    %v351 = vsel %vm287, 1, 0
    %v352 = vsel %vm288, 1, 0
    %v353 = vsel %vm289, 1, 0
    %v354 = vsel %vm290, 1, 0
    %v355 = vsel %vm291, 1, 0
    %v356 = vsel %vm292, 1, 0
    %v357 = vsel %vm293, 1, 0
    %v358 = vsel %vm294, 1, 0
    %v359 = vsel %vm295, 1, 0
    %v360 = vsel %vm296, 1, 0
    %v361 = vsel %vm297, 1, 0
    %v362 = vsel %vm298, 1, 0
    %v363 = vsel %vm299, 1, 0
    %v364 = vsel %vm300, 1, 0
    %v365 = vsel %vm301, 1, 0
    %v366 = vsel %vm302, 1, 0
    %v367 = vsel %vm303, 1, 0
    %v368 = vsel %vm304, 1, 0
    %v369 = vsel %vm305, 1, 0
    %v370 = vsel %vm306, 1, 0
    %v371 = vsel %vm307, 1, 0
    %v372 = vsel %vm308, 1, 0
    %v373 = vsel %vm309, 1, 0
    %v374 = vsel %vm310, 1, 0
    %v375 = vsel %vm311, 1, 0
    %v376 = vsel %vm312, 1, 0
    %v377 = vsel %vm313, 1, 0
    %v378 = vsel %vm314, 1, 0
    %v379 = vsel %vm315, 1, 0
    %v380 = vsel %vm316, 1, 0
    %v381 = vsel %vm317, 1, 0
    %v382 = vsel %vm318, 1, 0
    %v383 = vsel %vm319, 1, 0
    %v384 = vsel %vm320, 1, 0
    %v385 = vsel %vm321, 1, 0
    %v386 = vsel %vm322, 1, 0
    %v387 = vsel %vm323, 1, 0
    %v388 = vsel %vm324, 1, 0
    %v389 = vsel %vm325, 1, 0
    %v390 = vsel %vm326, 1, 0
    %v391 = vsel %vm327, 1, 0
    %v392 = vsel %vm328, 1, 0
    %v393 = vsel %vm329, 1, 0
    %v394 = vsel %vm330, 1, 0
    %v395 = vsel %vm331, 1, 0
    %v396 = vsel %vm332, 1, 0
    %v397 = vsel %vm333, 1, 0
    %v398 = vsel %vm334, 1, 0
    %v399 = vsel %vm335, 1, 0
    %v400 = vsel %vm336, 1, 0
    %v401 = vsel %vm337, 1, 0
    %v402 = vsel %vm338, 1, 0
    %v403 = vsel %vm339, 1, 0
    %v404 = vsel %vm340, 1, 0
    %v405 = vsel %vm341, 1, 0
    %v406 = vsel %vm342, 1, 0
    %v407 = vsel %vm343, 1, 0
    %v408 = vsel %vm344, 1, 0
    %v409 = vsel %vm345, 1, 0
    %v410 = vsel %vm346, 1, 0
    %v411 = vcvt.s32.f32 %v347
    %v412 = vcvt.s32.f32 %v348
    %v413 = vcvt.s32.f32 %v349
    %v414 = vcvt.s32.f32 %v350
    %v415 = vcvt.s32.f32 %v351
    %v416 = vcvt.s32.f32 %v352
    %v417 = vcvt.s32.f32 %v353
    %v418 = vcvt.s32.f32 %v354
    %v419 = vcvt.s32.f32 %v355
    %v420 = vcvt.s32.f32 %v356
    %v421 = vcvt.s32.f32 %v357
    %v422 = vcvt.s32.f32 %v358
    %v423 = vcvt.s32.f32 %v359
    %v424 = vcvt.s32.f32 %v360
    %v425 = vcvt.s32.f32 %v361
    %v426 = vcvt.s32.f32 %v362
    %v427 = vcvt.s32.f32 %v363
    %v428 = vcvt.s32.f32 %v364
    %v429 = vcvt.s32.f32 %v365
    %v430 = vcvt.s32.f32 %v366
    %v431 = vcvt.s32.f32 %v367
    %v432 = vcvt.s32.f32 %v368
    %v433 = vcvt.s32.f32 %v369
    %v434 = vcvt.s32.f32 %v370
    %v435 = vcvt.s32.f32 %v371
    %v436 = vcvt.s32.f32 %v372
    %v437 = vcvt.s32.f32 %v373
    %v438 = vcvt.s32.f32 %v374
    %v439 = vcvt.s32.f32 %v375
    %v440 = vcvt.s32.f32 %v376
    %v441 = vcvt.s32.f32 %v377
    %v442 = vcvt.s32.f32 %v378
    %v443 = vcvt.s32.f32 %v379
    %v444 = vcvt.s32.f32 %v380
    %v445 = vcvt.s32.f32 %v381
    %v446 = vcvt.s32.f32 %v382
    %v447 = vcvt.s32.f32 %v383
    %v448 = vcvt.s32.f32 %v384
    %v449 = vcvt.s32.f32 %v385
    %v450 = vcvt.s32.f32 %v386
    %v451 = vcvt.s32.f32 %v387
    %v452 = vcvt.s32.f32 %v388
    %v453 = vcvt.s32.f32 %v389
    %v454 = vcvt.s32.f32 %v390
    %v455 = vcvt.s32.f32 %v391
    %v456 = vcvt.s32.f32 %v392
    %v457 = vcvt.s32.f32 %v393
    %v458 = vcvt.s32.f32 %v394
    %v459 = vcvt.s32.f32 %v395
    %v460 = vcvt.s32.f32 %v396
    %v461 = vcvt.s32.f32 %v397
    %v462 = vcvt.s32.f32 %v398
    %v463 = vcvt.s32.f32 %v399
    %v464 = vcvt.s32.f32 %v400
    %v465 = vcvt.s32.f32 %v401
    %v466 = vcvt.s32.f32 %v402
    %v467 = vcvt.s32.f32 %v403
    %v468 = vcvt.s32.f32 %v404
    %v469 = vcvt.s32.f32 %v405
    %v470 = vcvt.s32.f32 %v406
    %v471 = vcvt.s32.f32 %v407
    %v472 = vcvt.s32.f32 %v408
    %v473 = vcvt.s32.f32 %v409
    %v474 = vcvt.s32.f32 %v410
    %v475 = vlaneseq
    %v476 = vshrl.u32 %v475, 7
    %v477 = vperm.slane %v84, 0
    %v478 = vperm.slane %v84, 1
    %v479 = vperm.slane %v84, 2
    %v480 = vperm.slane %v84, 3
    %vm481 = vcmp.eq.s32.totalorder %v477, %v476
    %vm482 = vcmp.eq.s32.totalorder %v478, %v476
    %vm483 = vcmp.eq.s32.totalorder %v479, %v476
    %vm484 = vcmp.eq.s32.totalorder %v480, %v476
    %v486 = vperm.slane %v85, 0
    %v487 = vperm.slane %v85, 1
    %v488 = vperm.slane %v85, 2
    %v489 = vperm.slane %v85, 3
    %v494 = vsel %vm481, %v486, 0.0
    %v495 = vsel %vm482, %v487, 0.0
    %v496 = vsel %vm483, %v488, 0.0
    %v497 = vsel %vm484, %v489, 0.0
    %v498 = vld [vmem:[#allocation2] sm:$0xff]
    %499 = vmatpush.msra.mxu0 %v426
    %500 = vmatpush.msra.mxu0 %v425
    %501 = vmatpush.msra.mxu0 %v424
    %502 = vmatpush.msra.mxu0 %v423
    %503 = vmatpush.msra.mxu0 %v422
    %504 = vmatpush.msra.mxu0 %v421
    %505 = vmatpush.msra.mxu0 %v420
    %506 = vmatpush.msra.mxu0 %v419
    %507 = vmatpush.msra.mxu0 %v418
    %508 = vmatpush.msra.mxu0 %v417
    %509 = vmatpush.msra.mxu0 %v416
    %510 = vmatpush.msra.mxu0 %v415
    %511 = vmatpush.msra.mxu0 %v414
    %512 = vmatpush.msra.mxu0 %v413
    %513 = vmatpush.msra.mxu0 %v412
    %514 = vmatpush.msra.mxu0 %v411
    %515 = vmatmul.f32.gmra.mxu0 %v494
    %v516 = vpop.f32.mrf.mxu0
    %v517 = vadd.f32 0.0, %v516
    %518 = vdwg.mxu0
    %519 = vmatpush.msra.mxu0 %v442
    %520 = vmatpush.msra.mxu0 %v441
    %521 = vmatpush.msra.mxu0 %v440
    %522 = vmatpush.msra.mxu0 %v439
    %523 = vmatpush.msra.mxu0 %v438
    %524 = vmatpush.msra.mxu0 %v437
    %525 = vmatpush.msra.mxu0 %v436
    %526 = vmatpush.msra.mxu0 %v435
    %527 = vmatpush.msra.mxu0 %v434
    %528 = vmatpush.msra.mxu0 %v433
    %529 = vmatpush.msra.mxu0 %v432
    %530 = vmatpush.msra.mxu0 %v431
    %531 = vmatpush.msra.mxu0 %v430
    %532 = vmatpush.msra.mxu0 %v429
    %533 = vmatpush.msra.mxu0 %v428
    %534 = vmatpush.msra.mxu0 %v427
    %535 = vmatmul.f32.gmra.mxu0 %v495
    %v536 = vpop.f32.mrf.mxu0
    %v537 = vadd.f32 %v517, %v536
    %538 = vdwg.mxu0
    %539 = vmatpush.msra.mxu0 %v458
    %540 = vmatpush.msra.mxu0 %v457
    %541 = vmatpush.msra.mxu0 %v456
    %542 = vmatpush.msra.mxu0 %v455
    %543 = vmatpush.msra.mxu0 %v454
    %544 = vmatpush.msra.mxu0 %v453
    %545 = vmatpush.msra.mxu0 %v452
    %546 = vmatpush.msra.mxu0 %v451
    %547 = vmatpush.msra.mxu0 %v450
    %548 = vmatpush.msra.mxu0 %v449
    %549 = vmatpush.msra.mxu0 %v448
    %550 = vmatpush.msra.mxu0 %v447
    %551 = vmatpush.msra.mxu0 %v446
    %552 = vmatpush.msra.mxu0 %v445
    %553 = vmatpush.msra.mxu0 %v444
    %554 = vmatpush.msra.mxu0 %v443
    %555 = vmatmul.f32.gmra.mxu0 %v496
    %v556 = vpop.f32.mrf.mxu0
    %v557 = vadd.f32 %v537, %v556
    %558 = vdwg.mxu0
    %559 = vmatpush.msra.mxu0 %v474
    %560 = vmatpush.msra.mxu0 %v473
    %561 = vmatpush.msra.mxu0 %v472
    %562 = vmatpush.msra.mxu0 %v471
    %563 = vmatpush.msra.mxu0 %v470
    %564 = vmatpush.msra.mxu0 %v469
    %565 = vmatpush.msra.mxu0 %v468
    %566 = vmatpush.msra.mxu0 %v467
    %567 = vmatpush.msra.mxu0 %v466
    %568 = vmatpush.msra.mxu0 %v465
    %569 = vmatpush.msra.mxu0 %v464
    %570 = vmatpush.msra.mxu0 %v463
    %571 = vmatpush.msra.mxu0 %v462
    %572 = vmatpush.msra.mxu0 %v461
    %573 = vmatpush.msra.mxu0 %v460
    %574 = vmatpush.msra.mxu0 %v459
    %575 = vmatmul.f32.gmra.mxu0 %v497
    %v576 = vpop.f32.mrf.mxu0
    %v577 = vadd.f32 %v557, %v576
    %578 = vdwg.mxu0
    %v579 = vadd.f32 %v498, %v577
    %580 = vst [vmem:[#allocation2] sm:$0xff] %v579
    // Predicated region
    $region18: #{tpu_custom_call.1} parent=1 // pred_check
      _
    $region19: #{tpu_custom_call.1} parent=1 // pred_check_branch
      %582 = sbr.rel (0) target = $region21
    $region20: #{tpu_custom_call.1} parent=1 // pred_region
      %584 = vsyncadd [#allocation3], 0
      %s586 = sshll.u32 [#allocation2], 4
      %s587 = int_to_ptr.vmem [resolvable:$true] %s586
      %s588 = sshll.u32 %s3, 4
      %s589 = int_to_ptr.hbm [resolvable:$true] %s588
      %591 = dma.vmem_to_hbm [thread:$0]  %s587, 128, %s589, [#allocation3]
    $region21: #{tpu_custom_call.1} parent=1 // pred_fallthru
      _
    // Predicated region
    $region22: #{tpu_custom_call.1} parent=1 // pred_check
      _
    $region23: #{tpu_custom_call.1} parent=1 // pred_check_branch
      %593 = sbr.rel (0) target = $region25
    $region24: #{tpu_custom_call.1} parent=1 // pred_region
      %595 = dma.done [#allocation3], 128
    $region25: #{tpu_custom_call.1} parent=1 // pred_fallthru
      _
    %596 = vsyncpa [#allocation3], 1

</llo_original>
